<compile_context>
chip_gen: v7x
topology: tpu7x:2x2x1
jax: 0.10.0
libtpu: 0.0.40
codegen_flags: <defaults>
</compile_context>

<pallas_src>
import jax
import jax.numpy as jnp
from jax.experimental import pallas as pl
from jax.experimental.pallas import tpu as pltpu

LANE = 128
HIDDEN = 64


def _round_up(n, m):
    return ((n + m - 1) // m) * m


def _pad2d(a, rows, cols):
    return jnp.pad(a, ((0, rows - a.shape[0]), (0, cols - a.shape[1])))


def actor_kernel(x_ref, w1_ref, b1_ref, w2_ref, b2_ref, w3_ref, b3_ref, o_ref):
    # fc1 + relu: bf16 MXU operands (in-kernel cast), f32 accumulate, f32 elementwise.
    x = x_ref[...].astype(jnp.bfloat16)
    h = jnp.dot(x, w1_ref[...], preferred_element_type=jnp.float32)
    h = jnp.maximum(h + b1_ref[...], 0.0)
    # fc2 + relu
    h = jnp.dot(h.astype(jnp.bfloat16), w2_ref[...], preferred_element_type=jnp.float32)
    h = jnp.maximum(h + b2_ref[...], 0.0)
    # fc3 + relu (lane-dense 128-wide matmul inside VMEM; narrow to the real
    # action width only at the HBM-facing store).
    h = jnp.dot(h.astype(jnp.bfloat16), w3_ref[...], preferred_element_type=jnp.float32)
    h = jnp.maximum(h + b3_ref[...], 0.0)
    o_ref[...] = h[:, : o_ref.shape[1]].astype(o_ref.dtype)


def init_actor_params(key, state_size, action_size):
    """Deterministic init mirroring nn.Linear's U(-1/sqrt(fan_in), 1/sqrt(fan_in)).
    Weights are stored transposed as [in_features, out_features]."""
    def linear(key, fan_in, fan_out):
        kw, kb = jax.random.split(key)
        bound = 1.0 / jnp.sqrt(fan_in)
        w = jax.random.uniform(kw, (fan_in, fan_out), jnp.float32, -bound, bound)
        b = jax.random.uniform(kb, (1, fan_out), jnp.float32, -bound, bound)
        return w, b

    k1, k2, k3 = jax.random.split(key, 3)
    w1, b1 = linear(k1, state_size, HIDDEN)
    w2, b2 = linear(k2, HIDDEN, HIDDEN)
    w3, b3 = linear(k3, HIDDEN, action_size)
    return dict(w1=w1, b1=b1, w2=w2, b2=b2, w3=w3, b3=b3)


def prepare_actor_params(params):
    """One-time lane padding + bf16 cast of the weights (hoisted out of forward).

    Zero padding is numerically exact: padded hidden units are relu(0) = 0 and
    padded action columns are dropped before the store.  w1 pads only the lane
    (N) axis so the streamed state input needs no padding at all."""
    w1, b1, w2, b2, w3, b3 = (params[k] for k in ("w1", "b1", "w2", "b2", "w3", "b3"))
    S, H = w1.shape
    A = w3.shape[1]
    H_pad = _round_up(H, LANE)
    A_pad = _round_up(A, LANE)
    return dict(
        w1=_pad2d(w1, S, H_pad).astype(jnp.bfloat16),
        w2=_pad2d(w2, H_pad, H_pad).astype(jnp.bfloat16),
        w3=_pad2d(w3, H_pad, A_pad).astype(jnp.bfloat16),
        b1=_pad2d(b1, 1, H_pad).astype(jnp.float32),
        b2=_pad2d(b2, 1, H_pad).astype(jnp.float32),
        b3=_pad2d(b3, 1, A_pad).astype(jnp.float32),
        action_size=A,
    )


def _batch_dimension_semantics():
    """CORE_PARALLEL only on v7x (2 TCs/chip); plain 'parallel' elsewhere."""
    kind = jax.devices()[0].device_kind.lower()
    if "v7" in kind or "7x" in kind:
        return (pltpu.CORE_PARALLEL,), True
    return ("parallel",), False


def actor_forward(state, prepared):
    """state: [B, state_size] float32.  prepared: output of prepare_actor_params."""
    w1, b1, w2, b2, w3, b3 = (prepared[k] for k in ("w1", "b1", "w2", "b2", "w3", "b3"))
    A = prepared["action_size"]
    B, S = state.shape
    H_pad = w2.shape[0]
    A_pad = w3.shape[1]

    dim_sem, two_cores = _batch_dimension_semantics()

    # Batch tile: multiple of 8, large cap (per-step overhead ~0.35us dominates
    # small tiles).  On v7x keep at least 2 grid steps so both cores get work.
    cap = 2048
    if two_cores:
        cap = min(cap, max(8, _round_up(pl.cdiv(B, 2), 8)))
    TM = min(cap, _round_up(B, 8))
    grid = (pl.cdiv(B, TM),)

    const = lambda shape: pl.BlockSpec(shape, lambda i: (0,) * len(shape))

    flops = 2 * B * (S * H_pad + H_pad * H_pad + H_pad * A_pad)
    bytes_accessed = (
        state.size * 4
        + (w1.size + w2.size + w3.size) * 2
        + (b1.size + b2.size + b3.size) * 4
        + B * A * 4
    )

    return pl.pallas_call(
        actor_kernel,
        out_shape=jax.ShapeDtypeStruct((B, A), jnp.float32),
        grid=grid,
        in_specs=[
            pl.BlockSpec((TM, S), lambda i: (i, 0)),       # streamed activations (unpadded)
            const((S, H_pad)), const((1, H_pad)),          # VMEM-resident weights/biases
            const((H_pad, H_pad)), const((1, H_pad)),
            const((H_pad, A_pad)), const((1, A_pad)),
        ],
        out_specs=pl.BlockSpec((TM, A), lambda i: (i, 0)),  # narrow HBM store, no slice pass
        compiler_params=pltpu.CompilerParams(dimension_semantics=dim_sem),
        cost_estimate=pl.CostEstimate(
            flops=flops, transcendentals=0, bytes_accessed=bytes_accessed
        ),
    )(state, w1, b1, w2, b2, w3, b3)


def actor_ref(state, params):
    """Pure-JAX reference mirroring the kernel's numeric path (bf16 matmul
    operands, f32 accumulation, f32 bias/ReLU).

    NOTE: the module spec literally ends in torch.relu(fc3(...)), so the kernel
    ends in ReLU (not the usual DDPG tanh)."""
    bf = jnp.bfloat16
    h = jnp.maximum(
        jnp.dot(state.astype(bf), params["w1"].astype(bf),
                preferred_element_type=jnp.float32) + params["b1"], 0.0)
    h = jnp.maximum(
        jnp.dot(h.astype(bf), params["w2"].astype(bf),
                preferred_element_type=jnp.float32) + params["b2"], 0.0)
    h = jnp.maximum(
        jnp.dot(h.astype(bf), params["w3"].astype(bf),
                preferred_element_type=jnp.float32) + params["b3"], 0.0)
    return h


if __name__ == "__main__":
    key = jax.random.PRNGKey(0)
    k_params, k_state = jax.random.split(key)

    batch = 2
    state_size = 8
    action_size = 4

    params = init_actor_params(k_params, state_size, action_size)
    prepared = prepare_actor_params(params)          # one-time pad + cast
    state = jax.random.normal(k_state, (batch, state_size), jnp.float32)

    out = actor_forward(state, prepared)
    jax.block_until_ready(out)

    ref = actor_ref(state, params)
    assert out.shape == (batch, action_size)
    assert jnp.allclose(out, ref, atol=1e-2, rtol=1e-2)

    print("KERNEL_OK")
</pallas_src>

<mosaic_0001>
module attributes {stable_mosaic.version = 11 : i64} {
  func.func @actor_kernel(%arg0: i32, %arg1: memref<8x8xf32, #tpu.memory_space<vmem>>, %arg2: memref<8x128xbf16, #tpu.memory_space<vmem>>, %arg3: memref<1x128xf32, #tpu.memory_space<vmem>>, %arg4: memref<128x128xbf16, #tpu.memory_space<vmem>>, %arg5: memref<1x128xf32, #tpu.memory_space<vmem>>, %arg6: memref<128x128xbf16, #tpu.memory_space<vmem>>, %arg7: memref<1x128xf32, #tpu.memory_space<vmem>>, %arg8: memref<8x4xf32, #tpu.memory_space<vmem>>) attributes {dimension_semantics = [#tpu.dimension_semantics<parallel>], iteration_bounds = array<i64: 1>, scalar_prefetch = 0 : i64, scratch_operands = 0 : i64, tpu.core_type = #tpu.core_type<tc>, window_params = [{transform_indices = @transform_0, window_bounds = array<i64: 8, 8>}, {pipeline_mode = #tpu.pipeline_mode<synchronous>, transform_indices = @transform_1, window_bounds = array<i64: 8, 128>}, {pipeline_mode = #tpu.pipeline_mode<synchronous>, transform_indices = @transform_2, window_bounds = array<i64: 1, 128>}, {pipeline_mode = #tpu.pipeline_mode<synchronous>, transform_indices = @transform_3, window_bounds = array<i64: 128, 128>}, {pipeline_mode = #tpu.pipeline_mode<synchronous>, transform_indices = @transform_4, window_bounds = array<i64: 1, 128>}, {pipeline_mode = #tpu.pipeline_mode<synchronous>, transform_indices = @transform_5, window_bounds = array<i64: 128, 128>}, {pipeline_mode = #tpu.pipeline_mode<synchronous>, transform_indices = @transform_6, window_bounds = array<i64: 1, 128>}, {transform_indices = @transform_7, window_bounds = array<i64: 8, 4>}]} {
    %c0 = arith.constant 0 : index
    %c0_0 = arith.constant 0 : index
    %0 = vector.load %arg1[%c0, %c0_0] : memref<8x8xf32, #tpu.memory_space<vmem>>, vector<8x8xf32>
    %1 = arith.truncf %0 : vector<8x8xf32> to vector<8x8xbf16>
    %c0_1 = arith.constant 0 : index
    %c0_2 = arith.constant 0 : index
    %2 = vector.load %arg2[%c0_1, %c0_2] : memref<8x128xbf16, #tpu.memory_space<vmem>>, vector<8x128xbf16>
    %cst = arith.constant dense<0.000000e+00> : vector<8x128xf32>
    %3 = tpu.matmul %1, %2, %cst {dimension_numbers = #tpu.dot_dimension_numbers<[1], [0], [0], [1], [0, 0, 1, 1], [], []>} : vector<8x8xbf16>, vector<8x128xbf16>, vector<8x128xf32> -> vector<8x128xf32>
    %c0_3 = arith.constant 0 : index
    %c0_4 = arith.constant 0 : index
    %4 = vector.load %arg3[%c0_3, %c0_4] : memref<1x128xf32, #tpu.memory_space<vmem>>, vector<1x128xf32>
    %5 = vector.broadcast %4 : vector<1x128xf32> to vector<8x128xf32>
    %6 = arith.addf %3, %5 : vector<8x128xf32>
    %cst_5 = arith.constant 0.000000e+00 : f32
    %7 = vector.broadcast %cst_5 : f32 to vector<8x128xf32>
    %8 = arith.maximumf %6, %7 : vector<8x128xf32>
    %9 = arith.truncf %8 : vector<8x128xf32> to vector<8x128xbf16>
    %c0_6 = arith.constant 0 : index
    %c0_7 = arith.constant 0 : index
    %10 = vector.load %arg4[%c0_6, %c0_7] : memref<128x128xbf16, #tpu.memory_space<vmem>>, vector<128x128xbf16>
    %cst_8 = arith.constant dense<0.000000e+00> : vector<8x128xf32>
    %11 = tpu.matmul %9, %10, %cst_8 {dimension_numbers = #tpu.dot_dimension_numbers<[1], [0], [0], [1], [0, 0, 1, 1], [], []>} : vector<8x128xbf16>, vector<128x128xbf16>, vector<8x128xf32> -> vector<8x128xf32>
    %c0_9 = arith.constant 0 : index
    %c0_10 = arith.constant 0 : index
    %12 = vector.load %arg5[%c0_9, %c0_10] : memref<1x128xf32, #tpu.memory_space<vmem>>, vector<1x128xf32>
    %13 = vector.broadcast %12 : vector<1x128xf32> to vector<8x128xf32>
    %14 = arith.addf %11, %13 : vector<8x128xf32>
    %cst_11 = arith.constant 0.000000e+00 : f32
    %15 = vector.broadcast %cst_11 : f32 to vector<8x128xf32>
    %16 = arith.maximumf %14, %15 : vector<8x128xf32>
    %17 = arith.truncf %16 : vector<8x128xf32> to vector<8x128xbf16>
    %c0_12 = arith.constant 0 : index
    %c0_13 = arith.constant 0 : index
    %18 = vector.load %arg6[%c0_12, %c0_13] : memref<128x128xbf16, #tpu.memory_space<vmem>>, vector<128x128xbf16>
    %cst_14 = arith.constant dense<0.000000e+00> : vector<8x128xf32>
    %19 = tpu.matmul %17, %18, %cst_14 {dimension_numbers = #tpu.dot_dimension_numbers<[1], [0], [0], [1], [0, 0, 1, 1], [], []>} : vector<8x128xbf16>, vector<128x128xbf16>, vector<8x128xf32> -> vector<8x128xf32>
    %c0_15 = arith.constant 0 : index
    %c0_16 = arith.constant 0 : index
    %20 = vector.load %arg7[%c0_15, %c0_16] : memref<1x128xf32, #tpu.memory_space<vmem>>, vector<1x128xf32>
    %21 = vector.broadcast %20 : vector<1x128xf32> to vector<8x128xf32>
    %22 = arith.addf %19, %21 : vector<8x128xf32>
    %cst_17 = arith.constant 0.000000e+00 : f32
    %23 = vector.broadcast %cst_17 : f32 to vector<8x128xf32>
    %24 = arith.maximumf %22, %23 : vector<8x128xf32>
    %25 = vector.extract_strided_slice %24 {offsets = [0, 0], sizes = [8, 4], strides = [1, 1]} : vector<8x128xf32> to vector<8x4xf32>
    %c0_18 = arith.constant 0 : index
    %c0_19 = arith.constant 0 : index
    %26 = vector.load %arg8[%c0_18, %c0_19] : memref<8x4xf32, #tpu.memory_space<vmem>>, vector<8x4xf32>
    tpu.vector_store %arg8[%c0_18, %c0_19], %25 {strides = array<i32>} : memref<8x4xf32, #tpu.memory_space<vmem>>, vector<8x4xf32>,
    return
  }
  func.func @transform_0(%arg0: i32) -> (i32, i32) {
    %c0_i32 = arith.constant 0 : i32
    %c0_i32_0 = arith.constant 0 : i32
    return %arg0, %c0_i32 : i32, i32
  }
  func.func @transform_1(%arg0: i32) -> (i32, i32) {
    %c0_i32 = arith.constant 0 : i32
    %c0_i32_0 = arith.constant 0 : i32
    %c0_i32_1 = arith.constant 0 : i32
    return %c0_i32, %c0_i32_0 : i32, i32
  }
  func.func @transform_2(%arg0: i32) -> (i32, i32) {
    %c0_i32 = arith.constant 0 : i32
    %c0_i32_0 = arith.constant 0 : i32
    %c0_i32_1 = arith.constant 0 : i32
    return %c0_i32, %c0_i32_0 : i32, i32
  }
  func.func @transform_3(%arg0: i32) -> (i32, i32) {
    %c0_i32 = arith.constant 0 : i32
    %c0_i32_0 = arith.constant 0 : i32
    %c0_i32_1 = arith.constant 0 : i32
    return %c0_i32, %c0_i32_0 : i32, i32
  }
  func.func @transform_4(%arg0: i32) -> (i32, i32) {
    %c0_i32 = arith.constant 0 : i32
    %c0_i32_0 = arith.constant 0 : i32
    %c0_i32_1 = arith.constant 0 : i32
    return %c0_i32, %c0_i32_0 : i32, i32
  }
  func.func @transform_5(%arg0: i32) -> (i32, i32) {
    %c0_i32 = arith.constant 0 : i32
    %c0_i32_0 = arith.constant 0 : i32
    %c0_i32_1 = arith.constant 0 : i32
    return %c0_i32, %c0_i32_0 : i32, i32
  }
  func.func @transform_6(%arg0: i32) -> (i32, i32) {
    %c0_i32 = arith.constant 0 : i32
    %c0_i32_0 = arith.constant 0 : i32
    %c0_i32_1 = arith.constant 0 : i32
    return %c0_i32, %c0_i32_0 : i32, i32
  }
  func.func @transform_7(%arg0: i32) -> (i32, i32) {
    %c0_i32 = arith.constant 0 : i32
    %c0_i32_0 = arith.constant 0 : i32
    return %arg0, %c0_i32 : i32, i32
  }
}

</mosaic_0001>

<llo_original>
// kernel: tpu_custom_call.1
$region0: #{tpu_custom_call.1}
  #allocation0 [shape = 'u32[]', space=smem, size = 0x4, offset = 0x4, fixed_abs, tag = 'smem constant byte address 0x4 - core index']
  #allocation1 [shape = 'u32[144,128]{1,0:T(1,128)}', space=vmem, size = 0x12000, scoped, tag = 'internal scratch']
  %s0 = inlined_call_operand.hbm [shape: f32[2,8], index: 0, kind: input, shape index: {}]
  %s1 = inlined_call_operand.hbm [shape: bf16[8,128], index: 1, kind: input, shape index: {}]
  %s2 = inlined_call_operand.vmem [shape: f32[1,128], index: 2, kind: input, shape index: {}]
  %s3 = inlined_call_operand.hbm [shape: bf16[128,128], index: 3, kind: input, shape index: {}]
  %s4 = inlined_call_operand.vmem [shape: f32[1,128], index: 4, kind: input, shape index: {}]
  %s5 = inlined_call_operand.hbm [shape: bf16[128,128], index: 5, kind: input, shape index: {}]
  %s6 = inlined_call_operand.vmem [shape: f32[1,128], index: 6, kind: input, shape index: {}]
  %s7 = inlined_call_operand.hbm [shape: f32[2,4], index: 7, kind: output, shape index: {}]
  %s8 = sld [smem:[#allocation0]]
  $region54: #{tpu_custom_call.1} parent=0
    _
  %s10 = ssub.s32 1, %s8
  %s11 = scalar_select 0, %s10, %s8
  $region1: #{tpu_custom_call.1} parent=0
    #allocation2 [shape = 'u8[4096]{0}', space=vmem, size = 0x1000, scoped, tag = 'input window, operand 0, single buffered']
    #allocation3 [shape = 's32[1]{0}', space=sflag, size = 0x4, scoped, tag = 'scoped memory for tpu_custom_call.1']
    #allocation4 [shape = 's32[1]{0}', space=sflag, size = 0x4, scoped, tag = 'scoped memory for tpu_custom_call.1']
    #allocation5 [shape = 'u8[2048]{0}', space=vmem, size = 0x800, scoped, tag = 'input window, operand 1, single buffered']
    #allocation6 [shape = 's32[1]{0}', space=sflag, size = 0x4, scoped, tag = 'scoped memory for tpu_custom_call.1']
    #allocation7 [shape = 'u8[32768]{0}', space=vmem, size = 0x8000, scoped, tag = 'input window, operand 3, single buffered']
    #allocation8 [shape = 'u8[32768]{0}', space=vmem, size = 0x8000, scoped, tag = 'input window, operand 5, single buffered']
    #allocation9 [shape = 's32[1]{0}', space=sflag, size = 0x4, scoped, tag = 'scoped memory for tpu_custom_call.1']
    #allocation10 [shape = 'u8[4096]{0}', space=vmem, size = 0x1000, scoped, tag = 'output window, operand 0, single buffered']
    %12 = vsyncpa [#allocation3], 0
    %13 = vsyncpa [#allocation6], 0
    %14 = vsyncpa [#allocation9], 0
    %15 = vsyncpa [#allocation4], 0
    // Predicated region
    $region2: #{tpu_custom_call.1} parent=1 // pred_check
      _
    $region3: #{tpu_custom_call.1} parent=1 // pred_check_branch
      %17 = sbr.rel (0) target = $region5
    $region4: #{tpu_custom_call.1} parent=1 // pred_region
      %s19 = ssub.s32 128, 32
      %20 = vsyncadd [#allocation3], %s19
      %s21 = sshll.u32 [#allocation2], 4
      %s22 = int_to_ptr.vmem [resolvable:$true] %s21
      %27 = dma.hbm_to_vmem [thread:$0]  %s0, 32, %s22, [#allocation3], 32, 32, 2
    $region5: #{tpu_custom_call.1} parent=1 // pred_fallthru
      _
    // Predicated region
    $region6: #{tpu_custom_call.1} parent=1 // pred_check
      _
    $region7: #{tpu_custom_call.1} parent=1 // pred_check_branch
      %29 = sbr.rel (0) target = $region9
    $region8: #{tpu_custom_call.1} parent=1 // pred_region
      %s31 = ssub.s32 64, 64
      %32 = vsyncadd [#allocation6], %s31
      %s34 = sshll.u32 [#allocation5], 4
      %s35 = int_to_ptr.vmem [resolvable:$true] %s34
      %37 = dma.hbm_to_vmem [thread:$0]  %s1, 64, %s35, [#allocation6]
    $region9: #{tpu_custom_call.1} parent=1 // pred_fallthru
      _
    // Predicated region
    $region10: #{tpu_custom_call.1} parent=1 // pred_check
      _
    $region11: #{tpu_custom_call.1} parent=1 // pred_check_branch
      %39 = sbr.rel (0) target = $region13
    $region12: #{tpu_custom_call.1} parent=1 // pred_region
      _
    $region13: #{tpu_custom_call.1} parent=1 // pred_fallthru
      _
    // Predicated region
    $region14: #{tpu_custom_call.1} parent=1 // pred_check
      _
    $region15: #{tpu_custom_call.1} parent=1 // pred_check_branch
      %41 = sbr.rel (0) target = $region17
    $region16: #{tpu_custom_call.1} parent=1 // pred_region
      %s43 = ssub.s32 1024, 1024
      %44 = vsyncadd [#allocation6], %s43
      %s45 = sshll.u32 [#allocation7], 4
      %s46 = int_to_ptr.vmem [resolvable:$true] %s45
      %51 = dma.hbm_to_vmem [thread:$0]  %s3, 1024, %s46, [#allocation6], 64, 64, 4
    $region17: #{tpu_custom_call.1} parent=1 // pred_fallthru
      _
    // Predicated region
    $region18: #{tpu_custom_call.1} parent=1 // pred_check
      _
    $region19: #{tpu_custom_call.1} parent=1 // pred_check_branch
      %53 = sbr.rel (0) target = $region21
    $region20: #{tpu_custom_call.1} parent=1 // pred_region
      _
    $region21: #{tpu_custom_call.1} parent=1 // pred_fallthru
      _
    // Predicated region
    $region22: #{tpu_custom_call.1} parent=1 // pred_check
      _
    $region23: #{tpu_custom_call.1} parent=1 // pred_check_branch
      %55 = sbr.rel (0) target = $region25
    $region24: #{tpu_custom_call.1} parent=1 // pred_region
      %s57 = ssub.s32 1024, 1024
      %58 = vsyncadd [#allocation9], %s57
      %s59 = sshll.u32 [#allocation8], 4
      %s60 = int_to_ptr.vmem [resolvable:$true] %s59
      %65 = dma.hbm_to_vmem [thread:$0]  %s5, 1024, %s60, [#allocation9], 64, 64, 4
    $region25: #{tpu_custom_call.1} parent=1 // pred_fallthru
      _
    // Predicated region
    $region26: #{tpu_custom_call.1} parent=1 // pred_check
      _
    $region27: #{tpu_custom_call.1} parent=1 // pred_check_branch
      %67 = sbr.rel (0) target = $region29
    $region28: #{tpu_custom_call.1} parent=1 // pred_region
      _
    $region29: #{tpu_custom_call.1} parent=1 // pred_fallthru
      _
    // Predicated region
    $region30: #{tpu_custom_call.1} parent=1 // pred_check
      _
    $region31: #{tpu_custom_call.1} parent=1 // pred_check_branch
      %69 = sbr.rel (0) target = $region33
    $region32: #{tpu_custom_call.1} parent=1 // pred_region
      %70 = dma.done [#allocation3], 128
    $region33: #{tpu_custom_call.1} parent=1 // pred_fallthru
      _
    // Predicated region
    $region34: #{tpu_custom_call.1} parent=1 // pred_check
      _
    $region35: #{tpu_custom_call.1} parent=1 // pred_check_branch
      %72 = sbr.rel (0) target = $region37
    $region36: #{tpu_custom_call.1} parent=1 // pred_region
      %73 = dma.done [#allocation6], 64
    $region37: #{tpu_custom_call.1} parent=1 // pred_fallthru
      _
    // Predicated region
    $region38: #{tpu_custom_call.1} parent=1 // pred_check
      _
    $region39: #{tpu_custom_call.1} parent=1 // pred_check_branch
      %75 = sbr.rel (0) target = $region41
    $region40: #{tpu_custom_call.1} parent=1 // pred_region
      %76 = dma.done [#allocation6], 1024
    $region41: #{tpu_custom_call.1} parent=1 // pred_fallthru
      _
    // Predicated region
    $region42: #{tpu_custom_call.1} parent=1 // pred_check
      _
    $region43: #{tpu_custom_call.1} parent=1 // pred_check_branch
      %78 = sbr.rel (0) target = $region45
    $region44: #{tpu_custom_call.1} parent=1 // pred_region
      %79 = dma.done [#allocation9], 1024
    $region45: #{tpu_custom_call.1} parent=1 // pred_fallthru
      _
    %v81 = vld [vmem:[#allocation2] sm:$0xff]
    %v82 = vpack.c.bf16 %v81, %v81
    %v83 = vld [vmem:[#allocation5] sm:$0xf]
    %v84 = vld [vmem:[%s2] sm:$0x1]
    %v86 = vlaneseq
    %v87 = vshrl.u32 %v86, 7
    %v88 = vsub.s32 0, %v87
    %v89 = vrot.slane %v84, %v88
    %vm91 = vcmask 64512
    %v93 = vsel %vm91, %v82, 0
    %vm95 = vcmask 1043456
    %v97 = vsel %vm95, %v83, 0
    %99 = vmatprep.subr.bf16.mxu0 0
    %100 = vmatpush1.bf16.msra.mxu0 %v97
    %101 = vmatprep.subr.bf16.mxu0 0
    %102 = vmatpush1.bf16.msra.mxu0 0
    %103 = vmatprep.subr.bf16.mxu0 0
    %104 = vmatpush1.bf16.msra.mxu0 0
    %105 = vmatprep.subr.bf16.mxu0 0
    %106 = vmatpush1.bf16.msra.mxu0 0
    %107 = vmatprep.subr.bf16.mxu0 0
    %108 = vmatpush1.bf16.msra.mxu0 0
    %109 = vmatprep.subr.bf16.mxu0 0
    %110 = vmatpush1.bf16.msra.mxu0 0
    %111 = vmatprep.subr.bf16.mxu0 0
    %112 = vmatpush1.bf16.msra.mxu0 0
    %113 = vmatprep.subr.bf16.mxu0 0
    %114 = vmatpush1.bf16.msra.mxu0 0
    %115 = vmatprep.subr.bf16.mxu0 0
    %116 = vmatpush1.bf16.msra.mxu0 0
    %117 = vmatprep.subr.bf16.mxu0 0
    %118 = vmatpush1.bf16.msra.mxu0 0
    %119 = vmatprep.subr.bf16.mxu0 0
    %120 = vmatpush1.bf16.msra.mxu0 0
    %121 = vmatprep.subr.bf16.mxu0 0
    %122 = vmatpush1.bf16.msra.mxu0 0
    %123 = vmatprep.subr.bf16.mxu0 0
    %124 = vmatpush1.bf16.msra.mxu0 0
    %125 = vmatprep.subr.bf16.mxu0 0
    %126 = vmatpush1.bf16.msra.mxu0 0
    %127 = vmatprep.subr.bf16.mxu0 0
    %128 = vmatpush1.bf16.msra.mxu0 0
    %129 = vmatprep.subr.bf16.mxu0 0
    %130 = vmatpush1.bf16.msra.mxu0 0
    %131 = vmatprep.mubr.bf16.mxu0 0
    %132 = vmatmul.mubr.bf16.gmra.mrb[0].mxu0 %v93
    %v133 = vpop.f32.mrb[0].mxu0
    %v134 = vadd.f32 %v89, %v133
    %v135 = vpop.f32.mrb[0].mxu0
    %v136 = vpop.f32.mrb[0].mxu0
    %v137 = vpop.f32.mrb[0].mxu0
    %138 = vdwg.mxu0
    %v139 = vmax.f32 %v134, 0.0
    %v140 = vpack.c.bf16 %v139, %v139
    %v141 = vld [vmem:[#allocation7] sm:$0xf]
    %v142 = vld [vmem:[#allocation7 + $0x4] sm:$0xf]
    %v143 = vld [vmem:[#allocation7 + $0x8] sm:$0xf]
    %v144 = vld [vmem:[#allocation7 + $0xc] sm:$0xf]
    %v145 = vld [vmem:[#allocation7 + $0x10] sm:$0xf]
    %v146 = vld [vmem:[#allocation7 + $0x14] sm:$0xf]
    %v147 = vld [vmem:[#allocation7 + $0x18] sm:$0xf]
    %v148 = vld [vmem:[#allocation7 + $0x1c] sm:$0xf]
    %v149 = vld [vmem:[#allocation7 + $0x20] sm:$0xf]
    %v150 = vld [vmem:[#allocation7 + $0x24] sm:$0xf]
    %v151 = vld [vmem:[#allocation7 + $0x28] sm:$0xf]
    %v152 = vld [vmem:[#allocation7 + $0x2c] sm:$0xf]
    %v153 = vld [vmem:[#allocation7 + $0x30] sm:$0xf]
    %v154 = vld [vmem:[#allocation7 + $0x34] sm:$0xf]
    %v155 = vld [vmem:[#allocation7 + $0x38] sm:$0xf]
    %v156 = vld [vmem:[#allocation7 + $0x3c] sm:$0xf]
    %v157 = vld [vmem:[%s4] sm:$0x1]
    %v159 = vlaneseq
    %v160 = vshrl.u32 %v159, 7
    %v161 = vsub.s32 0, %v160
    %v162 = vrot.slane %v157, %v161
    %v180 = vunpack.c.l.b16 %v141
    %v181 = vunpack.c.l.b16 %v142
    %v182 = vunpack.c.l.b16 %v143
    %v183 = vunpack.c.l.b16 %v144
    %v184 = vunpack.c.l.b16 %v145
    %v185 = vunpack.c.l.b16 %v146
    %v186 = vunpack.c.l.b16 %v147
    %v187 = vunpack.c.l.b16 %v148
    %v188 = vunpack.c.l.b16 %v149
    %v189 = vunpack.c.l.b16 %v150
    %v190 = vunpack.c.l.b16 %v151
    %v191 = vunpack.c.l.b16 %v152
    %v192 = vunpack.c.l.b16 %v153
    %v193 = vunpack.c.l.b16 %v154
    %v194 = vunpack.c.l.b16 %v155
    %v195 = vunpack.c.l.b16 %v156
    %v196 = vpack.c.b16 %v181, %v180
    %v197 = vpack.c.b16 %v183, %v182
    %v198 = vpack.c.b16 %v185, %v184
    %v199 = vpack.c.b16 %v187, %v186
    %v200 = vpack.c.b16 %v189, %v188
    %v201 = vpack.c.b16 %v191, %v190
    %v202 = vpack.c.b16 %v193, %v192
    %v203 = vpack.c.b16 %v195, %v194
    %212 = vmatprep.subr.bf16.mxu0 0
    %213 = vmatpush1.bf16.msra.mxu0 %v196
    %214 = vmatprep.subr.bf16.mxu0 0
    %215 = vmatpush1.bf16.msra.mxu0 %v197
    %216 = vmatprep.subr.bf16.mxu0 0
    %217 = vmatpush1.bf16.msra.mxu0 %v198
    %218 = vmatprep.subr.bf16.mxu0 0
    %219 = vmatpush1.bf16.msra.mxu0 %v199
    %220 = vmatprep.subr.bf16.mxu0 0
    %221 = vmatpush1.bf16.msra.mxu0 %v200
    %222 = vmatprep.subr.bf16.mxu0 0
    %223 = vmatpush1.bf16.msra.mxu0 %v201
    %224 = vmatprep.subr.bf16.mxu0 0
    %225 = vmatpush1.bf16.msra.mxu0 %v202
    %226 = vmatprep.subr.bf16.mxu0 0
    %227 = vmatpush1.bf16.msra.mxu0 %v203
    %228 = vmatprep.subr.bf16.mxu0 0
    %229 = vmatpush1.bf16.msra.mxu0 0
    %230 = vmatprep.subr.bf16.mxu0 0
    %231 = vmatpush1.bf16.msra.mxu0 0
    %232 = vmatprep.subr.bf16.mxu0 0
    %233 = vmatpush1.bf16.msra.mxu0 0
    %234 = vmatprep.subr.bf16.mxu0 0
    %235 = vmatpush1.bf16.msra.mxu0 0
    %236 = vmatprep.subr.bf16.mxu0 0
    %237 = vmatpush1.bf16.msra.mxu0 0
    %238 = vmatprep.subr.bf16.mxu0 0
    %239 = vmatpush1.bf16.msra.mxu0 0
    %240 = vmatprep.subr.bf16.mxu0 0
    %241 = vmatpush1.bf16.msra.mxu0 0
    %242 = vmatprep.subr.bf16.mxu0 0
    %243 = vmatpush1.bf16.msra.mxu0 0
    %244 = vmatprep.mubr.bf16.mxu0 0
    %245 = vmatmul.mubr.bf16.gmra.mrb[0].mxu0 %v140
    %v246 = vpop.f32.mrb[0].mxu0
    %v247 = vadd.f32 %v162, %v246
    %v248 = vpop.f32.mrb[0].mxu0
    %v249 = vpop.f32.mrb[0].mxu0
    %v250 = vpop.f32.mrb[0].mxu0
    %251 = vdwg.mxu0
    %v252 = vmax.f32 %v247, 0.0
    %v253 = vpack.c.bf16 %v252, %v252
    %v254 = vld [vmem:[#allocation8] sm:$0xf]
    %v255 = vld [vmem:[#allocation8 + $0x4] sm:$0xf]
    %v256 = vld [vmem:[#allocation8 + $0x8] sm:$0xf]
    %v257 = vld [vmem:[#allocation8 + $0xc] sm:$0xf]
    %v258 = vld [vmem:[#allocation8 + $0x10] sm:$0xf]
    %v259 = vld [vmem:[#allocation8 + $0x14] sm:$0xf]
    %v260 = vld [vmem:[#allocation8 + $0x18] sm:$0xf]
    %v261 = vld [vmem:[#allocation8 + $0x1c] sm:$0xf]
    %v262 = vld [vmem:[#allocation8 + $0x20] sm:$0xf]
    %v263 = vld [vmem:[#allocation8 + $0x24] sm:$0xf]
    %v264 = vld [vmem:[#allocation8 + $0x28] sm:$0xf]
    %v265 = vld [vmem:[#allocation8 + $0x2c] sm:$0xf]
    %v266 = vld [vmem:[#allocation8 + $0x30] sm:$0xf]
    %v267 = vld [vmem:[#allocation8 + $0x34] sm:$0xf]
    %v268 = vld [vmem:[#allocation8 + $0x38] sm:$0xf]
    %v269 = vld [vmem:[#allocation8 + $0x3c] sm:$0xf]
    %v270 = vld [vmem:[%s6] sm:$0x1]
    %v272 = vlaneseq
    %v273 = vshrl.u32 %v272, 7
    %v274 = vsub.s32 0, %v273
    %v275 = vrot.slane %v270, %v274
    %v293 = vunpack.c.l.b16 %v254
    %v294 = vunpack.c.l.b16 %v255
    %v295 = vunpack.c.l.b16 %v256
    %v296 = vunpack.c.l.b16 %v257
    %v297 = vunpack.c.l.b16 %v258
    %v298 = vunpack.c.l.b16 %v259
    %v299 = vunpack.c.l.b16 %v260
    %v300 = vunpack.c.l.b16 %v261
    %v301 = vunpack.c.l.b16 %v262
    %v302 = vunpack.c.l.b16 %v263
    %v303 = vunpack.c.l.b16 %v264
    %v304 = vunpack.c.l.b16 %v265
    %v305 = vunpack.c.l.b16 %v266
    %v306 = vunpack.c.l.b16 %v267
    %v307 = vunpack.c.l.b16 %v268
    %v308 = vunpack.c.l.b16 %v269
    %v309 = vpack.c.b16 %v294, %v293
    %v310 = vpack.c.b16 %v296, %v295
    %v311 = vpack.c.b16 %v298, %v297
    %v312 = vpack.c.b16 %v300, %v299
    %v313 = vpack.c.b16 %v302, %v301
    %v314 = vpack.c.b16 %v304, %v303
    %v315 = vpack.c.b16 %v306, %v305
    %v316 = vpack.c.b16 %v308, %v307
    %325 = vmatprep.subr.bf16.mxu0 0
    %326 = vmatpush1.bf16.msra.mxu0 %v309
    %327 = vmatprep.subr.bf16.mxu0 0
    %328 = vmatpush1.bf16.msra.mxu0 %v310
    %329 = vmatprep.subr.bf16.mxu0 0
    %330 = vmatpush1.bf16.msra.mxu0 %v311
    %331 = vmatprep.subr.bf16.mxu0 0
    %332 = vmatpush1.bf16.msra.mxu0 %v312
    %333 = vmatprep.subr.bf16.mxu0 0
    %334 = vmatpush1.bf16.msra.mxu0 %v313
    %335 = vmatprep.subr.bf16.mxu0 0
    %336 = vmatpush1.bf16.msra.mxu0 %v314
    %337 = vmatprep.subr.bf16.mxu0 0
    %338 = vmatpush1.bf16.msra.mxu0 %v315
    %339 = vmatprep.subr.bf16.mxu0 0
    %340 = vmatpush1.bf16.msra.mxu0 %v316
    %341 = vmatprep.subr.bf16.mxu0 0
    %342 = vmatpush1.bf16.msra.mxu0 0
    %343 = vmatprep.subr.bf16.mxu0 0
    %344 = vmatpush1.bf16.msra.mxu0 0
    %345 = vmatprep.subr.bf16.mxu0 0
    %346 = vmatpush1.bf16.msra.mxu0 0
    %347 = vmatprep.subr.bf16.mxu0 0
    %348 = vmatpush1.bf16.msra.mxu0 0
    %349 = vmatprep.subr.bf16.mxu0 0
    %350 = vmatpush1.bf16.msra.mxu0 0
    %351 = vmatprep.subr.bf16.mxu0 0
    %352 = vmatpush1.bf16.msra.mxu0 0
    %353 = vmatprep.subr.bf16.mxu0 0
    %354 = vmatpush1.bf16.msra.mxu0 0
    %355 = vmatprep.subr.bf16.mxu0 0
    %356 = vmatpush1.bf16.msra.mxu0 0
    %357 = vmatprep.mubr.bf16.mxu0 0
    %358 = vmatmul.mubr.bf16.gmra.mrb[0].mxu0 %v253
    %v359 = vpop.f32.mrb[0].mxu0
    %v360 = vadd.f32 %v275, %v359
    %v361 = vpop.f32.mrb[0].mxu0
    %v362 = vpop.f32.mrb[0].mxu0
    %v363 = vpop.f32.mrb[0].mxu0
    %364 = vdwg.mxu0
    %v365 = vmax.f32 %v360, 0.0
    %vm366 = vcmask 31744
    %367 = vst.msk [vmem:[#allocation10] sm:$0xff] %vm366, %v365
    // Predicated region
    $region46: #{tpu_custom_call.1} parent=1 // pred_check
      _
    $region47: #{tpu_custom_call.1} parent=1 // pred_check_branch
      %369 = sbr.rel (0) target = $region49
    $region48: #{tpu_custom_call.1} parent=1 // pred_region
      %s371 = ssub.s32 128, 32
      %372 = vsyncadd [#allocation4], %s371
      %s373 = sshll.u32 [#allocation10], 4
      %s374 = int_to_ptr.vmem [resolvable:$true] %s373
      %379 = dma.vmem_to_hbm [thread:$0]  %s374, 32, %s7, [#allocation4], 32, 32, 2
    $region49: #{tpu_custom_call.1} parent=1 // pred_fallthru
      _
    // Predicated region
    $region50: #{tpu_custom_call.1} parent=1 // pred_check
      _
    $region51: #{tpu_custom_call.1} parent=1 // pred_check_branch
      %381 = sbr.rel (0) target = $region53
    $region52: #{tpu_custom_call.1} parent=1 // pred_region
      %382 = dma.done [#allocation4], 128
    $region53: #{tpu_custom_call.1} parent=1 // pred_fallthru
      _
    %383 = vsyncpa [#allocation3], 1
    %384 = vsyncpa [#allocation6], 1
    %385 = vsyncpa [#allocation9], 1
    %386 = vsyncpa [#allocation4], 1

</llo_original>
